<compile_context>
chip_gen: v7x
topology: tpu7x:2x2x1
jax: 0.10.0
libtpu: 0.0.40
codegen_flags: <defaults>
</compile_context>

<pallas_src>
import functools

import jax
import jax.numpy as jnp
from jax.experimental import pallas as pl
from jax.experimental.pallas import tpu as pltpu


_ACTS = {
    "relu": lambda h: jnp.maximum(h, 0.0),
    # tanh approximation: cheaper on the EUP (esp. v5e, which has no bf16 EUP)
    "gelu": functools.partial(jax.nn.gelu, approximate=True),
    "silu": jax.nn.silu,
    "identity": lambda h: h,
}
_TRANSCENDENTAL_ACTS = ("gelu", "silu")


def _round_up(x, m):
    return -(-int(x) // m) * m


def _round_down(x, m):
    return (int(x) // m) * m


def _mxu_round_rows(tm):
    """Round a row-tile size down to MXU-friendly granularity (floor 16)."""
    tm = int(tm)
    if tm >= 256:
        return _round_down(tm, 256)   # 2x256^2 MXU on v6e/v7x
    if tm >= 128:
        return 128                    # 4x128^2 MXU on v5e
    return max(16, _round_down(tm, 16))


def _vmem_caps():
    """(tile-sizing budget, compiler vmem limit) in bytes, generation-aware."""
    try:
        cap = int(pltpu.get_tpu_info().vmem_capacity_bytes)
    except Exception:
        cap = 64 * 1024 * 1024  # conservative (v7x-sized) fallback
    return (cap * 3) // 4, (cap * 7) // 8


# --------------------------------------------------------------------------
# Kernels
# --------------------------------------------------------------------------

def _ffn_kernel_full(x_ref, w1_ref, b1_ref, w2_ref, b2_ref, o_ref, *,
                     act_fn, compute_dtype):
    # x: [TM, D] native dtype; W1: [D, H] bf16; b1: [1, H] f32;
    # W2: [H, D] bf16; b2: [1, D] f32.  Cast to bf16 happens in-kernel.
    xb = x_ref[...].astype(compute_dtype)
    h = jnp.dot(xb, w1_ref[...], preferred_element_type=jnp.float32) + b1_ref[...]
    h = act_fn(h)                                                     # f32, VPU/EUP
    y = jnp.dot(h.astype(compute_dtype), w2_ref[...],
                preferred_element_type=jnp.float32) + b2_ref[...]
    o_ref[...] = y.astype(o_ref.dtype)


def _ffn_kernel_htiled(x_ref, w1_ref, b1_ref, w2_ref, b2_ref, o_ref, acc_ref, *,
                       act_fn, compute_dtype):
    # Hidden-dim-tiled: grid = (row_tiles, H // TH), accumulate y in f32 scratch.
    j = pl.program_id(1)

    @pl.when(j == 0)
    def _init():
        acc_ref[...] = jnp.zeros_like(acc_ref)

    xb = x_ref[...].astype(compute_dtype)
    h = jnp.dot(xb, w1_ref[...], preferred_element_type=jnp.float32) + b1_ref[...]
    h = act_fn(h)
    acc_ref[...] += jnp.dot(h.astype(compute_dtype), w2_ref[...],
                            preferred_element_type=jnp.float32)

    @pl.when(j == pl.num_programs(1) - 1)
    def _finalize():
        o_ref[...] = (acc_ref[...] + b2_ref[...]).astype(o_ref.dtype)


# --------------------------------------------------------------------------
# Wrapper
# --------------------------------------------------------------------------

def prepare_ffn_params(w1, b1, w2, b2, compute_dtype=jnp.bfloat16):
    """Pre-bake parameter layouts once (outside the hot path).

    Torch layout: linear.weight is (out_features, in_features); we store the
    transposed (in, out) matrices in the MXU-friendly compute dtype and keep
    biases as f32 row vectors.
    """
    return {
        "w1": jnp.asarray(w1).T.astype(compute_dtype),             # (D, H)
        "b1": jnp.asarray(b1).reshape(1, -1).astype(jnp.float32),  # (1, H)
        "w2": jnp.asarray(w2).T.astype(compute_dtype),             # (H, D)
        "b2": jnp.asarray(b2).reshape(1, -1).astype(jnp.float32),  # (1, D)
    }


def feed_forward(x, params, *, act="relu", tile_rows=None, hidden_tile=None,
                 compute_dtype=jnp.bfloat16, out_dtype=None):
    """x: (..., dim). Returns (..., dim) in `out_dtype` (default: x.dtype)."""
    orig_shape = x.shape
    dim = x.shape[-1]
    d_in, hidden = params["w1"].shape
    assert d_in == dim, (d_in, dim)
    assert params["w2"].shape == (hidden, dim)
    out_dtype = x.dtype if out_dtype is None else out_dtype
    act_fn = _ACTS[act]

    x2 = x.reshape(-1, dim)              # view only; no wrapper cast / pad
    n_rows = x2.shape[0]

    in_it = x2.dtype.itemsize
    out_it = jnp.dtype(out_dtype).itemsize
    cd_it = jnp.dtype(compute_dtype).itemsize
    budget, vmem_limit = _vmem_caps()

    # ---- full-weights path accounting (weights resident, single-buffered) ----
    w_fixed = cd_it * 2 * dim * hidden + 4 * (hidden + dim)
    per_row_full = (2 * in_it * dim        # x tile (double-buffered)
                    + 2 * out_it * dim     # out tile (double-buffered)
                    + 4 * hidden           # h (f32)
                    + cd_it * hidden       # h cast for 2nd matmul
                    + 4 * dim)             # y (f32)
    tm_full_budget = (budget - w_fixed) // per_row_full

    def _row_tile(tm_budget):
        tm = min(int(tm_budget), 4096)
        # keep >= 2 row tiles when the problem allows, so the "parallel" row
        # axis can be sharded across v7x's two TensorCores
        tm = min(tm, max(16, _round_up(-(-n_rows // 2), 16)))
        return _mxu_round_rows(max(tm, 16))

    cost = pl.CostEstimate(
        flops=4 * n_rows * dim * hidden,
        transcendentals=(n_rows * hidden) if act in _TRANSCENDENTAL_ACTS else 0,
        bytes_accessed=n_rows * dim * (in_it + out_it) + w_fixed,
    )

    use_full_path = (hidden_tile is None) and (tm_full_budget >= 16)

    if use_full_path:
        tm = (max(16, _round_down(tile_rows, 16)) if tile_rows is not None
              else _row_tile(tm_full_budget))
        grid = (-(-n_rows // tm),)

        def _call(single_buffer_consts):
            if single_buffer_consts:
                const = lambda shape: pl.BlockSpec(          # noqa: E731
                    shape, lambda i: (0, 0), pipeline_mode=pl.Buffered(1))
            else:
                const = lambda shape: pl.BlockSpec(shape, lambda i: (0, 0))  # noqa: E731
            return pl.pallas_call(
                functools.partial(_ffn_kernel_full, act_fn=act_fn,
                                  compute_dtype=compute_dtype),
                out_shape=jax.ShapeDtypeStruct((n_rows, dim), out_dtype),
                grid_spec=pltpu.PrefetchScalarGridSpec(
                    num_scalar_prefetch=0,
                    grid=grid,
                    in_specs=[
                        pl.BlockSpec((tm, dim), lambda i: (i, 0)),   # x rows
                        const((dim, hidden)),                        # W1^T
                        const((1, hidden)),                          # b1
                        const((hidden, dim)),                        # W2^T
                        const((1, dim)),                             # b2
                    ],
                    out_specs=pl.BlockSpec((tm, dim), lambda i: (i, 0)),
                ),
                compiler_params=pltpu.CompilerParams(
                    dimension_semantics=("parallel",),
                    vmem_limit_bytes=vmem_limit),
                cost_estimate=cost,
            )(x2, params["w1"], params["b1"], params["w2"], params["b2"])

        try:
            out = _call(True)
        except Exception:
            # Fallback if this JAX version rejects pipeline_mode=Buffered(1).
            out = _call(False)

    else:
        # ---- hidden-dim-tiled accumulator path ----
        def _per_tile_fixed(t):
            # W1/W2 tiles double-buffered + b1 tile double-buffered + b2.
            return 4 * cd_it * dim * t + 2 * 4 * t + 2 * 4 * dim

        def _per_row_h(t):
            return (2 * in_it * dim + 2 * out_it * dim + 4 * dim  # x, out, acc
                    + 4 * t + cd_it * t)                          # h f32 + bf16

        if hidden_tile is not None:
            th = int(hidden_tile)
        else:
            cands = [t for t in range(128, hidden, 128) if hidden % t == 0]
            th = None
            for t in sorted(cands, reverse=True):
                if _per_tile_fixed(t) + 256 * _per_row_h(t) <= budget:
                    th = t
                    break
            if th is None:
                # TODO(synk): if hidden has no 128-multiple divisor, weights
                # could be zero-padded along H once at prepare time.
                th = cands[0] if cands else hidden
        assert hidden % th == 0, (hidden, th)

        tm = (max(16, _round_down(tile_rows, 16)) if tile_rows is not None
              else _row_tile((budget - _per_tile_fixed(th)) // _per_row_h(th)))
        grid = (-(-n_rows // tm), hidden // th)

        out = pl.pallas_call(
            functools.partial(_ffn_kernel_htiled, act_fn=act_fn,
                              compute_dtype=compute_dtype),
            out_shape=jax.ShapeDtypeStruct((n_rows, dim), out_dtype),
            grid_spec=pltpu.PrefetchScalarGridSpec(
                num_scalar_prefetch=0,
                grid=grid,
                in_specs=[
                    pl.BlockSpec((tm, dim), lambda i, j: (i, 0)),   # x rows
                    pl.BlockSpec((dim, th), lambda i, j: (0, j)),   # W1 h-tile
                    pl.BlockSpec((1, th), lambda i, j: (0, j)),     # b1 h-tile
                    pl.BlockSpec((th, dim), lambda i, j: (j, 0)),   # W2 h-tile
                    pl.BlockSpec((1, dim), lambda i, j: (0, 0)),    # b2
                ],
                out_specs=pl.BlockSpec((tm, dim), lambda i, j: (i, 0)),
                scratch_shapes=[pltpu.VMEM((tm, dim), jnp.float32)],
            ),
            compiler_params=pltpu.CompilerParams(
                dimension_semantics=("parallel", "arbitrary"),
                vmem_limit_bytes=vmem_limit),
            cost_estimate=cost,
        )(x2, params["w1"], params["b1"], params["w2"], params["b2"])

    return out.reshape(orig_shape[:-1] + (dim,))


def _reference(x, w1, b1, w2, b2, act):
    """f32 reference on bf16-rounded operands (matches the kernel dtype path)."""
    f32 = jnp.float32
    rb = lambda a: a.astype(jnp.bfloat16).astype(f32)  # noqa: E731
    h = rb(x) @ rb(w1).T + b1.astype(f32)
    h = _ACTS[act](h)
    y = rb(h) @ rb(w2).T + b2.astype(f32)
    return y


if __name__ == "__main__":
    key = jax.random.PRNGKey(0)

    def make_case(batch, seq, dim, mult, k):
        hidden = dim * mult
        ks = jax.random.split(k, 5)
        x = jax.random.normal(ks[0], (batch, seq, dim), jnp.float32)
        # Torch layouts: linear_1.weight (hidden, dim), linear_2.weight (dim, hidden).
        w1 = 0.1 * jax.random.normal(ks[1], (hidden, dim), jnp.float32)
        b1 = 0.1 * jax.random.normal(ks[2], (hidden,), jnp.float32)
        w2 = 0.1 * jax.random.normal(ks[3], (dim, hidden), jnp.float32)
        b2 = 0.1 * jax.random.normal(ks[4], (dim,), jnp.float32)
        return x, w1, b1, w2, b2

    def check(out, x, w1, b1, w2, b2, act, tol=2e-2):
        ref = _reference(x, w1, b1, w2, b2, act)
        assert out.shape == x.shape, (out.shape, x.shape)
        err = float(jnp.max(jnp.abs(out.astype(jnp.float32) - ref)))
        assert jnp.allclose(out.astype(jnp.float32), ref, atol=tol, rtol=tol), err

    k1, k2 = jax.random.split(key)

    # Case 1: module-sized toy (batch=2, seq=8, dim=32, hidden multiplier=2).
    x, w1, b1, w2, b2 = make_case(2, 8, 32, 2, k1)
    params = prepare_ffn_params(w1, b1, w2, b2)
    out = jax.block_until_ready(feed_forward(x, params, act="relu"))
    check(out, x, w1, b1, w2, b2, "relu")
    out_id = jax.block_until_ready(feed_forward(x, params, act="identity"))
    check(out_id, x, w1, b1, w2, b2, "identity")

    # Case 2: lane-dense shape exercising the hidden-tiled accumulator path.
    x, w1, b1, w2, b2 = make_case(2, 8, 128, 4, k2)
    params = prepare_ffn_params(w1, b1, w2, b2)
    out_h = jax.block_until_ready(
        feed_forward(x, params, act="gelu", hidden_tile=256))
    check(out_h, x, w1, b1, w2, b2, "gelu")

    print("KERNEL_OK")
</pallas_src>

<mosaic_0001>
module attributes {stable_mosaic.version = 11 : i64} {
  func.func @_ffn_kernel_full(%arg0: i32, %arg1: memref<16x32xf32, #tpu.memory_space<vmem>>, %arg2: memref<32x64xbf16, #tpu.memory_space<vmem>>, %arg3: memref<1x64xf32, #tpu.memory_space<vmem>>, %arg4: memref<64x32xbf16, #tpu.memory_space<vmem>>, %arg5: memref<1x32xf32, #tpu.memory_space<vmem>>, %arg6: memref<16x32xf32, #tpu.memory_space<vmem>>) attributes {dimension_semantics = [#tpu.dimension_semantics<parallel>], iteration_bounds = array<i64: 1>, scalar_prefetch = 0 : i64, scratch_operands = 0 : i64, tpu.core_type = #tpu.core_type<tc>, window_params = [{transform_indices = @transform_0, window_bounds = array<i64: 16, 32>}, {pipeline_mode = #tpu.pipeline_mode<synchronous>, transform_indices = @transform_1, window_bounds = array<i64: 32, 64>}, {pipeline_mode = #tpu.pipeline_mode<synchronous>, transform_indices = @transform_2, window_bounds = array<i64: 1, 64>}, {pipeline_mode = #tpu.pipeline_mode<synchronous>, transform_indices = @transform_3, window_bounds = array<i64: 64, 32>}, {pipeline_mode = #tpu.pipeline_mode<synchronous>, transform_indices = @transform_4, window_bounds = array<i64: 1, 32>}, {transform_indices = @transform_5, window_bounds = array<i64: 16, 32>}]} {
    %c0 = arith.constant 0 : index
    %c0_0 = arith.constant 0 : index
    %0 = vector.load %arg1[%c0, %c0_0] : memref<16x32xf32, #tpu.memory_space<vmem>>, vector<16x32xf32>
    %1 = arith.truncf %0 : vector<16x32xf32> to vector<16x32xbf16>
    %c0_1 = arith.constant 0 : index
    %c0_2 = arith.constant 0 : index
    %2 = vector.load %arg2[%c0_1, %c0_2] : memref<32x64xbf16, #tpu.memory_space<vmem>>, vector<32x64xbf16>
    %cst = arith.constant dense<0.000000e+00> : vector<16x64xf32>
    %3 = tpu.matmul %1, %2, %cst {dimension_numbers = #tpu.dot_dimension_numbers<[1], [0], [0], [1], [0, 0, 1, 1], [], []>} : vector<16x32xbf16>, vector<32x64xbf16>, vector<16x64xf32> -> vector<16x64xf32>
    %c0_3 = arith.constant 0 : index
    %c0_4 = arith.constant 0 : index
    %4 = vector.load %arg3[%c0_3, %c0_4] : memref<1x64xf32, #tpu.memory_space<vmem>>, vector<1x64xf32>
    %5 = vector.broadcast %4 : vector<1x64xf32> to vector<16x64xf32>
    %6 = arith.addf %3, %5 : vector<16x64xf32>
    %cst_5 = arith.constant 0.000000e+00 : f32
    %7 = vector.broadcast %cst_5 : f32 to vector<16x64xf32>
    %8 = arith.maximumf %6, %7 : vector<16x64xf32>
    %9 = arith.truncf %8 : vector<16x64xf32> to vector<16x64xbf16>
    %c0_6 = arith.constant 0 : index
    %c0_7 = arith.constant 0 : index
    %10 = vector.load %arg4[%c0_6, %c0_7] : memref<64x32xbf16, #tpu.memory_space<vmem>>, vector<64x32xbf16>
    %cst_8 = arith.constant dense<0.000000e+00> : vector<16x32xf32>
    %11 = tpu.matmul %9, %10, %cst_8 {dimension_numbers = #tpu.dot_dimension_numbers<[1], [0], [0], [1], [0, 0, 1, 1], [], []>} : vector<16x64xbf16>, vector<64x32xbf16>, vector<16x32xf32> -> vector<16x32xf32>
    %c0_9 = arith.constant 0 : index
    %c0_10 = arith.constant 0 : index
    %12 = vector.load %arg5[%c0_9, %c0_10] : memref<1x32xf32, #tpu.memory_space<vmem>>, vector<1x32xf32>
    %13 = vector.broadcast %12 : vector<1x32xf32> to vector<16x32xf32>
    %14 = arith.addf %11, %13 : vector<16x32xf32>
    %c0_11 = arith.constant 0 : index
    %c0_12 = arith.constant 0 : index
    %15 = vector.load %arg6[%c0_11, %c0_12] : memref<16x32xf32, #tpu.memory_space<vmem>>, vector<16x32xf32>
    tpu.vector_store %arg6[%c0_11, %c0_12], %14 {strides = array<i32>} : memref<16x32xf32, #tpu.memory_space<vmem>>, vector<16x32xf32>,
    return
  }
  func.func @transform_0(%arg0: i32) -> (i32, i32) {
    %c0_i32 = arith.constant 0 : i32
    %c0_i32_0 = arith.constant 0 : i32
    return %arg0, %c0_i32 : i32, i32
  }
  func.func @transform_1(%arg0: i32) -> (i32, i32) {
    %c0_i32 = arith.constant 0 : i32
    %c0_i32_0 = arith.constant 0 : i32
    %c0_i32_1 = arith.constant 0 : i32
    return %c0_i32, %c0_i32_0 : i32, i32
  }
  func.func @transform_2(%arg0: i32) -> (i32, i32) {
    %c0_i32 = arith.constant 0 : i32
    %c0_i32_0 = arith.constant 0 : i32
    %c0_i32_1 = arith.constant 0 : i32
    return %c0_i32, %c0_i32_0 : i32, i32
  }
  func.func @transform_3(%arg0: i32) -> (i32, i32) {
    %c0_i32 = arith.constant 0 : i32
    %c0_i32_0 = arith.constant 0 : i32
    %c0_i32_1 = arith.constant 0 : i32
    return %c0_i32, %c0_i32_0 : i32, i32
  }
  func.func @transform_4(%arg0: i32) -> (i32, i32) {
    %c0_i32 = arith.constant 0 : i32
    %c0_i32_0 = arith.constant 0 : i32
    %c0_i32_1 = arith.constant 0 : i32
    return %c0_i32, %c0_i32_0 : i32, i32
  }
  func.func @transform_5(%arg0: i32) -> (i32, i32) {
    %c0_i32 = arith.constant 0 : i32
    %c0_i32_0 = arith.constant 0 : i32
    return %arg0, %c0_i32 : i32, i32
  }
}

module attributes {stable_mosaic.version = 11 : i64} {
  func.func @_ffn_kernel_full(%arg0: i32, %arg1: memref<16x32xf32, #tpu.memory_space<vmem>>, %arg2: memref<32x64xbf16, #tpu.memory_space<vmem>>, %arg3: memref<1x64xf32, #tpu.memory_space<vmem>>, %arg4: memref<64x32xbf16, #tpu.memory_space<vmem>>, %arg5: memref<1x32xf32, #tpu.memory_space<vmem>>, %arg6: memref<16x32xf32, #tpu.memory_space<vmem>>) attributes {dimension_semantics = [#tpu.dimension_semantics<parallel>], iteration_bounds = array<i64: 1>, scalar_prefetch = 0 : i64, scratch_operands = 0 : i64, tpu.core_type = #tpu.core_type<tc>, window_params = [{transform_indices = @transform_0, window_bounds = array<i64: 16, 32>}, {pipeline_mode = #tpu.pipeline_mode<synchronous>, transform_indices = @transform_1, window_bounds = array<i64: 32, 64>}, {pipeline_mode = #tpu.pipeline_mode<synchronous>, transform_indices = @transform_2, window_bounds = array<i64: 1, 64>}, {pipeline_mode = #tpu.pipeline_mode<synchronous>, transform_indices = @transform_3, window_bounds = array<i64: 64, 32>}, {pipeline_mode = #tpu.pipeline_mode<synchronous>, transform_indices = @transform_4, window_bounds = array<i64: 1, 32>}, {transform_indices = @transform_5, window_bounds = array<i64: 16, 32>}]} {
    %c0 = arith.constant 0 : index
    %c0_0 = arith.constant 0 : index
    %0 = vector.load %arg1[%c0, %c0_0] : memref<16x32xf32, #tpu.memory_space<vmem>>, vector<16x32xf32>
    %1 = arith.truncf %0 : vector<16x32xf32> to vector<16x32xbf16>
    %c0_1 = arith.constant 0 : index
    %c0_2 = arith.constant 0 : index
    %2 = vector.load %arg2[%c0_1, %c0_2] : memref<32x64xbf16, #tpu.memory_space<vmem>>, vector<32x64xbf16>
    %cst = arith.constant dense<0.000000e+00> : vector<16x64xf32>
    %3 = tpu.matmul %1, %2, %cst {dimension_numbers = #tpu.dot_dimension_numbers<[1], [0], [0], [1], [0, 0, 1, 1], [], []>} : vector<16x32xbf16>, vector<32x64xbf16>, vector<16x64xf32> -> vector<16x64xf32>
    %c0_3 = arith.constant 0 : index
    %c0_4 = arith.constant 0 : index
    %4 = vector.load %arg3[%c0_3, %c0_4] : memref<1x64xf32, #tpu.memory_space<vmem>>, vector<1x64xf32>
    %5 = vector.broadcast %4 : vector<1x64xf32> to vector<16x64xf32>
    %6 = arith.addf %3, %5 : vector<16x64xf32>
    %cst_5 = arith.constant 0.000000e+00 : f32
    %7 = vector.broadcast %cst_5 : f32 to vector<16x64xf32>
    %8 = arith.maximumf %6, %7 : vector<16x64xf32>
    %9 = arith.truncf %8 : vector<16x64xf32> to vector<16x64xbf16>
    %c0_6 = arith.constant 0 : index
    %c0_7 = arith.constant 0 : index
    %10 = vector.load %arg4[%c0_6, %c0_7] : memref<64x32xbf16, #tpu.memory_space<vmem>>, vector<64x32xbf16>
    %cst_8 = arith.constant dense<0.000000e+00> : vector<16x32xf32>
    %11 = tpu.matmul %9, %10, %cst_8 {dimension_numbers = #tpu.dot_dimension_numbers<[1], [0], [0], [1], [0, 0, 1, 1], [], []>} : vector<16x64xbf16>, vector<64x32xbf16>, vector<16x32xf32> -> vector<16x32xf32>
    %c0_9 = arith.constant 0 : index
    %c0_10 = arith.constant 0 : index
    %12 = vector.load %arg5[%c0_9, %c0_10] : memref<1x32xf32, #tpu.memory_space<vmem>>, vector<1x32xf32>
    %13 = vector.broadcast %12 : vector<1x32xf32> to vector<16x32xf32>
    %14 = arith.addf %11, %13 : vector<16x32xf32>
    %c0_11 = arith.constant 0 : index
    %c0_12 = arith.constant 0 : index
    %15 = vector.load %arg6[%c0_11, %c0_12] : memref<16x32xf32, #tpu.memory_space<vmem>>, vector<16x32xf32>
    tpu.vector_store %arg6[%c0_11, %c0_12], %14 {strides = array<i32>} : memref<16x32xf32, #tpu.memory_space<vmem>>, vector<16x32xf32>,
    return
  }
  func.func @transform_0(%arg0: i32) -> (i32, i32) {
    %c0_i32 = arith.constant 0 : i32
    %c0_i32_0 = arith.constant 0 : i32
    return %arg0, %c0_i32 : i32, i32
  }
  func.func @transform_1(%arg0: i32) -> (i32, i32) {
    %c0_i32 = arith.constant 0 : i32
    %c0_i32_0 = arith.constant 0 : i32
    %c0_i32_1 = arith.constant 0 : i32
    return %c0_i32, %c0_i32_0 : i32, i32
  }
  func.func @transform_2(%arg0: i32) -> (i32, i32) {
    %c0_i32 = arith.constant 0 : i32
    %c0_i32_0 = arith.constant 0 : i32
    %c0_i32_1 = arith.constant 0 : i32
    return %c0_i32, %c0_i32_0 : i32, i32
  }
  func.func @transform_3(%arg0: i32) -> (i32, i32) {
    %c0_i32 = arith.constant 0 : i32
    %c0_i32_0 = arith.constant 0 : i32
    %c0_i32_1 = arith.constant 0 : i32
    return %c0_i32, %c0_i32_0 : i32, i32
  }
  func.func @transform_4(%arg0: i32) -> (i32, i32) {
    %c0_i32 = arith.constant 0 : i32
    %c0_i32_0 = arith.constant 0 : i32
    %c0_i32_1 = arith.constant 0 : i32
    return %c0_i32, %c0_i32_0 : i32, i32
  }
  func.func @transform_5(%arg0: i32) -> (i32, i32) {
    %c0_i32 = arith.constant 0 : i32
    %c0_i32_0 = arith.constant 0 : i32
    return %arg0, %c0_i32 : i32, i32
  }
}

</mosaic_0001>

<llo_original>
// kernel: tpu_custom_call.1
$region0: #{tpu_custom_call.1}
  #allocation0 [shape = 'u32[]', space=smem, size = 0x4, offset = 0x4, fixed_abs, tag = 'smem constant byte address 0x4 - core index']
  #allocation1 [shape = 'u32[144,128]{1,0:T(1,128)}', space=vmem, size = 0x12000, scoped, tag = 'internal scratch']
  %s0 = inlined_call_operand.vmem [shape: f32[16,32], index: 0, kind: input, shape index: {}]
  %s1 = inlined_call_operand.vmem [shape: bf16[32,64], index: 1, kind: input, shape index: {}]
  %s2 = inlined_call_operand.vmem [shape: f32[1,64], index: 2, kind: input, shape index: {}]
  %s3 = inlined_call_operand.vmem [shape: bf16[64,32], index: 3, kind: input, shape index: {}]
  %s4 = inlined_call_operand.vmem [shape: f32[1,32], index: 4, kind: input, shape index: {}]
  %s5 = inlined_call_operand.hbm [shape: f32[16,32], index: 5, kind: output, shape index: {}]
  %s6 = sld [smem:[#allocation0]]
  $region30: #{tpu_custom_call.1} parent=0
    _
  %s8 = ssub.s32 1, %s6
  %s9 = scalar_select 0, %s8, %s6
  $region1: #{tpu_custom_call.1} parent=0
    #allocation2 [shape = 'u8[8192]{0}', space=vmem, size = 0x2000, scoped, tag = 'output window, operand 0, single buffered']
    #allocation3 [shape = 's32[1]{0}', space=sflag, size = 0x4, scoped, tag = 'scoped memory for tpu_custom_call.1']
    %10 = vsyncpa [#allocation3], 0
    // Predicated region
    $region2: #{tpu_custom_call.1} parent=1 // pred_check
      _
    $region3: #{tpu_custom_call.1} parent=1 // pred_check_branch
      %12 = sbr.rel (0) target = $region5
    $region4: #{tpu_custom_call.1} parent=1 // pred_region
      _
    $region5: #{tpu_custom_call.1} parent=1 // pred_fallthru
      _
    // Predicated region
    $region6: #{tpu_custom_call.1} parent=1 // pred_check
      _
    $region7: #{tpu_custom_call.1} parent=1 // pred_check_branch
      %14 = sbr.rel (0) target = $region9
    $region8: #{tpu_custom_call.1} parent=1 // pred_region
      _
    $region9: #{tpu_custom_call.1} parent=1 // pred_fallthru
      _
    // Predicated region
    $region10: #{tpu_custom_call.1} parent=1 // pred_check
      _
    $region11: #{tpu_custom_call.1} parent=1 // pred_check_branch
      %16 = sbr.rel (0) target = $region13
    $region12: #{tpu_custom_call.1} parent=1 // pred_region
      _
    $region13: #{tpu_custom_call.1} parent=1 // pred_fallthru
      _
    // Predicated region
    $region14: #{tpu_custom_call.1} parent=1 // pred_check
      _
    $region15: #{tpu_custom_call.1} parent=1 // pred_check_branch
      %18 = sbr.rel (0) target = $region17
    $region16: #{tpu_custom_call.1} parent=1 // pred_region
      _
    $region17: #{tpu_custom_call.1} parent=1 // pred_fallthru
      _
    // Predicated region
    $region18: #{tpu_custom_call.1} parent=1 // pred_check
      _
    $region19: #{tpu_custom_call.1} parent=1 // pred_check_branch
      %20 = sbr.rel (0) target = $region21
    $region20: #{tpu_custom_call.1} parent=1 // pred_region
      _
    $region21: #{tpu_custom_call.1} parent=1 // pred_fallthru
      _
    %v22 = vld [vmem:[%s0] sm:$0xff]
    %v23 = vld [vmem:[%s0 + $0x8] sm:$0xff]
    %v24 = vpack.c.bf16 %v23, %v22
    %v25 = vld [vmem:[%s1] sm:$0xf]
    %v26 = vld [vmem:[%s1 + $0x4] sm:$0xf]
    %v27 = vld [vmem:[%s1 + $0x8] sm:$0xf]
    %v28 = vld [vmem:[%s1 + $0xc] sm:$0xf]
    %v29 = vld [vmem:[%s2] sm:$0x1]
    %v31 = vlaneseq
    %v32 = vshrl.u32 %v31, 7
    %v33 = vsub.s32 0, %v32
    %v34 = vrot.slane %v29, %v33
    %v40 = vunpack.c.l.b16 %v25
    %v41 = vunpack.c.l.b16 %v26
    %v42 = vunpack.c.l.b16 %v27
    %v43 = vunpack.c.l.b16 %v28
    %v44 = vpack.c.b16 %v41, %v40
    %v45 = vpack.c.b16 %v43, %v42
    %vm48 = vcmask 261120
    %v50 = vsel %vm48, %v24, 0
    %52 = vmatprep.subr.bf16.mxu0 0
    %53 = vmatpush1.bf16.msra.mxu0 %v44
    %54 = vmatprep.subr.bf16.mxu0 0
    %55 = vmatpush1.bf16.msra.mxu0 %v45
    %56 = vmatprep.subr.bf16.mxu0 0
    %57 = vmatpush1.bf16.msra.mxu0 0
    %58 = vmatprep.subr.bf16.mxu0 0
    %59 = vmatpush1.bf16.msra.mxu0 0
    %60 = vmatprep.subr.bf16.mxu0 0
    %61 = vmatpush1.bf16.msra.mxu0 0
    %62 = vmatprep.subr.bf16.mxu0 0
    %63 = vmatpush1.bf16.msra.mxu0 0
    %64 = vmatprep.subr.bf16.mxu0 0
    %65 = vmatpush1.bf16.msra.mxu0 0
    %66 = vmatprep.subr.bf16.mxu0 0
    %67 = vmatpush1.bf16.msra.mxu0 0
    %68 = vmatprep.subr.bf16.mxu0 0
    %69 = vmatpush1.bf16.msra.mxu0 0
    %70 = vmatprep.subr.bf16.mxu0 0
    %71 = vmatpush1.bf16.msra.mxu0 0
    %72 = vmatprep.subr.bf16.mxu0 0
    %73 = vmatpush1.bf16.msra.mxu0 0
    %74 = vmatprep.subr.bf16.mxu0 0
    %75 = vmatpush1.bf16.msra.mxu0 0
    %76 = vmatprep.subr.bf16.mxu0 0
    %77 = vmatpush1.bf16.msra.mxu0 0
    %78 = vmatprep.subr.bf16.mxu0 0
    %79 = vmatpush1.bf16.msra.mxu0 0
    %80 = vmatprep.subr.bf16.mxu0 0
    %81 = vmatpush1.bf16.msra.mxu0 0
    %82 = vmatprep.subr.bf16.mxu0 0
    %83 = vmatpush1.bf16.msra.mxu0 0
    %84 = vmatprep.mubr.bf16.mxu0 0
    %85 = vmatmul.mubr.bf16.gmra.mrb[0].mxu0 %v50
    %v86 = vpop.f32.mrb[0].mxu0
    %v87 = vadd.f32 %v34, %v86
    %v88 = vpop.f32.mrb[0].mxu0
    %v89 = vpop.f32.mrb[0].mxu0
    %v90 = vadd.f32 %v34, %v89
    %v91 = vpop.f32.mrb[0].mxu0
    %92 = vdwg.mxu0
    %v93 = vmax.f32 %v87, 0.0
    %v94 = vmax.f32 %v90, 0.0
    %v95 = vpack.c.bf16 %v94, %v93
    %v96 = vld [vmem:[%s3] sm:$0xf]
    %v97 = vld [vmem:[%s3 + $0x4] sm:$0xf]
    %v98 = vld [vmem:[%s3 + $0x8] sm:$0xf]
    %v99 = vld [vmem:[%s3 + $0xc] sm:$0xf]
    %v100 = vld [vmem:[%s3 + $0x10] sm:$0xf]
    %v101 = vld [vmem:[%s3 + $0x14] sm:$0xf]
    %v102 = vld [vmem:[%s3 + $0x18] sm:$0xf]
    %v103 = vld [vmem:[%s3 + $0x1c] sm:$0xf]
    %v104 = vld [vmem:[%s4] sm:$0x1]
    %v106 = vlaneseq
    %v107 = vshrl.u32 %v106, 7
    %v108 = vsub.s32 0, %v107
    %v109 = vrot.slane %v104, %v108
    %v119 = vunpack.c.l.b16 %v96
    %v120 = vunpack.c.l.b16 %v97
    %v121 = vunpack.c.l.b16 %v98
    %v122 = vunpack.c.l.b16 %v99
    %v123 = vunpack.c.l.b16 %v100
    %v124 = vunpack.c.l.b16 %v101
    %v125 = vunpack.c.l.b16 %v102
    %v126 = vunpack.c.l.b16 %v103
    %v127 = vpack.c.b16 %v120, %v119
    %v128 = vpack.c.b16 %v122, %v121
    %v129 = vpack.c.b16 %v124, %v123
    %v130 = vpack.c.b16 %v126, %v125
    %vm135 = vcmask 523264
    %v137 = vsel %vm135, %v95, 0
    %139 = vmatprep.subr.bf16.mxu0 0
    %140 = vmatpush1.bf16.msra.mxu0 %v127
    %141 = vmatprep.subr.bf16.mxu0 0
    %142 = vmatpush1.bf16.msra.mxu0 %v128
    %143 = vmatprep.subr.bf16.mxu0 0
    %144 = vmatpush1.bf16.msra.mxu0 %v129
    %145 = vmatprep.subr.bf16.mxu0 0
    %146 = vmatpush1.bf16.msra.mxu0 %v130
    %147 = vmatprep.subr.bf16.mxu0 0
    %148 = vmatpush1.bf16.msra.mxu0 0
    %149 = vmatprep.subr.bf16.mxu0 0
    %150 = vmatpush1.bf16.msra.mxu0 0
    %151 = vmatprep.subr.bf16.mxu0 0
    %152 = vmatpush1.bf16.msra.mxu0 0
    %153 = vmatprep.subr.bf16.mxu0 0
    %154 = vmatpush1.bf16.msra.mxu0 0
    %155 = vmatprep.subr.bf16.mxu0 0
    %156 = vmatpush1.bf16.msra.mxu0 0
    %157 = vmatprep.subr.bf16.mxu0 0
    %158 = vmatpush1.bf16.msra.mxu0 0
    %159 = vmatprep.subr.bf16.mxu0 0
    %160 = vmatpush1.bf16.msra.mxu0 0
    %161 = vmatprep.subr.bf16.mxu0 0
    %162 = vmatpush1.bf16.msra.mxu0 0
    %163 = vmatprep.subr.bf16.mxu0 0
    %164 = vmatpush1.bf16.msra.mxu0 0
    %165 = vmatprep.subr.bf16.mxu0 0
    %166 = vmatpush1.bf16.msra.mxu0 0
    %167 = vmatprep.subr.bf16.mxu0 0
    %168 = vmatpush1.bf16.msra.mxu0 0
    %169 = vmatprep.subr.bf16.mxu0 0
    %170 = vmatpush1.bf16.msra.mxu0 0
    %171 = vmatprep.mubr.bf16.mxu0 0
    %172 = vmatmul.mubr.bf16.gmra.mrb[0].mxu0 %v137
    %v173 = vpop.f32.mrb[0].mxu0
    %v174 = vadd.f32 %v109, %v173
    %v175 = vpop.f32.mrb[0].mxu0
    %v176 = vpop.f32.mrb[0].mxu0
    %v177 = vadd.f32 %v109, %v176
    %v178 = vpop.f32.mrb[0].mxu0
    %179 = vdwg.mxu0
    %180 = vst.msk [vmem:[#allocation2] sm:$0xff] %vm48, %v174
    %181 = vst.msk [vmem:[#allocation2 + $0x8] sm:$0xff] %vm48, %v177
    // Predicated region
    $region22: #{tpu_custom_call.1} parent=1 // pred_check
      _
    $region23: #{tpu_custom_call.1} parent=1 // pred_check_branch
      %183 = sbr.rel (0) target = $region25
    $region24: #{tpu_custom_call.1} parent=1 // pred_region
      %s185 = ssub.s32 256, 256
      %186 = vsyncadd [#allocation3], %s185
      %s187 = sshll.u32 [#allocation2], 4
      %s188 = int_to_ptr.vmem [resolvable:$true] %s187
      %193 = dma.vmem_to_hbm [thread:$0]  %s188, 256, %s5, [#allocation3], 128, 128, 8
    $region25: #{tpu_custom_call.1} parent=1 // pred_fallthru
      _
    // Predicated region
    $region26: #{tpu_custom_call.1} parent=1 // pred_check
      _
    $region27: #{tpu_custom_call.1} parent=1 // pred_check_branch
      %195 = sbr.rel (0) target = $region29
    $region28: #{tpu_custom_call.1} parent=1 // pred_region
      %196 = dma.done [#allocation3], 256
    $region29: #{tpu_custom_call.1} parent=1 // pred_fallthru
      _
    %197 = vsyncpa [#allocation3], 1

// kernel: tpu_custom_call.1
$region0: #{tpu_custom_call.1}
  #allocation0 [shape = 'u32[]', space=smem, size = 0x4, offset = 0x4, fixed_abs, tag = 'smem constant byte address 0x4 - core index']
  #allocation1 [shape = 'u32[144,128]{1,0:T(1,128)}', space=vmem, size = 0x12000, scoped, tag = 'internal scratch']
  %s0 = inlined_call_operand.vmem [shape: f32[16,32], index: 0, kind: input, shape index: {}]
  %s1 = inlined_call_operand.vmem [shape: bf16[32,64], index: 1, kind: input, shape index: {}]
  %s2 = inlined_call_operand.vmem [shape: f32[1,64], index: 2, kind: input, shape index: {}]
  %s3 = inlined_call_operand.vmem [shape: bf16[64,32], index: 3, kind: input, shape index: {}]
  %s4 = inlined_call_operand.vmem [shape: f32[1,32], index: 4, kind: input, shape index: {}]
  %s5 = inlined_call_operand.hbm [shape: f32[16,32], index: 5, kind: output, shape index: {}]
  %s6 = sld [smem:[#allocation0]]
  $region30: #{tpu_custom_call.1} parent=0
    _
  %s8 = ssub.s32 1, %s6
  %s9 = scalar_select 0, %s8, %s6
  $region1: #{tpu_custom_call.1} parent=0
    #allocation2 [shape = 'u8[8192]{0}', space=vmem, size = 0x2000, scoped, tag = 'output window, operand 0, single buffered']
    #allocation3 [shape = 's32[1]{0}', space=sflag, size = 0x4, scoped, tag = 'scoped memory for tpu_custom_call.1']
    %10 = vsyncpa [#allocation3], 0
    // Predicated region
    $region2: #{tpu_custom_call.1} parent=1 // pred_check
      _
    $region3: #{tpu_custom_call.1} parent=1 // pred_check_branch
      %12 = sbr.rel (0) target = $region5
    $region4: #{tpu_custom_call.1} parent=1 // pred_region
      _
    $region5: #{tpu_custom_call.1} parent=1 // pred_fallthru
      _
    // Predicated region
    $region6: #{tpu_custom_call.1} parent=1 // pred_check
      _
    $region7: #{tpu_custom_call.1} parent=1 // pred_check_branch
      %14 = sbr.rel (0) target = $region9
    $region8: #{tpu_custom_call.1} parent=1 // pred_region
      _
    $region9: #{tpu_custom_call.1} parent=1 // pred_fallthru
      _
    // Predicated region
    $region10: #{tpu_custom_call.1} parent=1 // pred_check
      _
    $region11: #{tpu_custom_call.1} parent=1 // pred_check_branch
      %16 = sbr.rel (0) target = $region13
    $region12: #{tpu_custom_call.1} parent=1 // pred_region
      _
    $region13: #{tpu_custom_call.1} parent=1 // pred_fallthru
      _
    // Predicated region
    $region14: #{tpu_custom_call.1} parent=1 // pred_check
      _
    $region15: #{tpu_custom_call.1} parent=1 // pred_check_branch
      %18 = sbr.rel (0) target = $region17
    $region16: #{tpu_custom_call.1} parent=1 // pred_region
      _
    $region17: #{tpu_custom_call.1} parent=1 // pred_fallthru
      _
    // Predicated region
    $region18: #{tpu_custom_call.1} parent=1 // pred_check
      _
    $region19: #{tpu_custom_call.1} parent=1 // pred_check_branch
      %20 = sbr.rel (0) target = $region21
    $region20: #{tpu_custom_call.1} parent=1 // pred_region
      _
    $region21: #{tpu_custom_call.1} parent=1 // pred_fallthru
      _
    %v22 = vld [vmem:[%s0] sm:$0xff]
    %v23 = vld [vmem:[%s0 + $0x8] sm:$0xff]
    %v24 = vpack.c.bf16 %v23, %v22
    %v25 = vld [vmem:[%s1] sm:$0xf]
    %v26 = vld [vmem:[%s1 + $0x4] sm:$0xf]
    %v27 = vld [vmem:[%s1 + $0x8] sm:$0xf]
    %v28 = vld [vmem:[%s1 + $0xc] sm:$0xf]
    %v29 = vld [vmem:[%s2] sm:$0x1]
    %v31 = vlaneseq
    %v32 = vshrl.u32 %v31, 7
    %v33 = vsub.s32 0, %v32
    %v34 = vrot.slane %v29, %v33
    %v40 = vunpack.c.l.b16 %v25
    %v41 = vunpack.c.l.b16 %v26
    %v42 = vunpack.c.l.b16 %v27
    %v43 = vunpack.c.l.b16 %v28
    %v44 = vpack.c.b16 %v41, %v40
    %v45 = vpack.c.b16 %v43, %v42
    %vm48 = vcmask 261120
    %v50 = vsel %vm48, %v24, 0
    %52 = vmatprep.subr.bf16.mxu0 0
    %53 = vmatpush1.bf16.msra.mxu0 %v44
    %54 = vmatprep.subr.bf16.mxu0 0
    %55 = vmatpush1.bf16.msra.mxu0 %v45
    %56 = vmatprep.subr.bf16.mxu0 0
    %57 = vmatpush1.bf16.msra.mxu0 0
    %58 = vmatprep.subr.bf16.mxu0 0
    %59 = vmatpush1.bf16.msra.mxu0 0
    %60 = vmatprep.subr.bf16.mxu0 0
    %61 = vmatpush1.bf16.msra.mxu0 0
    %62 = vmatprep.subr.bf16.mxu0 0
    %63 = vmatpush1.bf16.msra.mxu0 0
    %64 = vmatprep.subr.bf16.mxu0 0
    %65 = vmatpush1.bf16.msra.mxu0 0
    %66 = vmatprep.subr.bf16.mxu0 0
    %67 = vmatpush1.bf16.msra.mxu0 0
    %68 = vmatprep.subr.bf16.mxu0 0
    %69 = vmatpush1.bf16.msra.mxu0 0
    %70 = vmatprep.subr.bf16.mxu0 0
    %71 = vmatpush1.bf16.msra.mxu0 0
    %72 = vmatprep.subr.bf16.mxu0 0
    %73 = vmatpush1.bf16.msra.mxu0 0
    %74 = vmatprep.subr.bf16.mxu0 0
    %75 = vmatpush1.bf16.msra.mxu0 0
    %76 = vmatprep.subr.bf16.mxu0 0
    %77 = vmatpush1.bf16.msra.mxu0 0
    %78 = vmatprep.subr.bf16.mxu0 0
    %79 = vmatpush1.bf16.msra.mxu0 0
    %80 = vmatprep.subr.bf16.mxu0 0
    %81 = vmatpush1.bf16.msra.mxu0 0
    %82 = vmatprep.subr.bf16.mxu0 0
    %83 = vmatpush1.bf16.msra.mxu0 0
    %84 = vmatprep.mubr.bf16.mxu0 0
    %85 = vmatmul.mubr.bf16.gmra.mrb[0].mxu0 %v50
    %v86 = vpop.f32.mrb[0].mxu0
    %v87 = vadd.f32 %v34, %v86
    %v88 = vpop.f32.mrb[0].mxu0
    %v89 = vpop.f32.mrb[0].mxu0
    %v90 = vadd.f32 %v34, %v89
    %v91 = vpop.f32.mrb[0].mxu0
    %92 = vdwg.mxu0
    %v93 = vmax.f32 %v87, 0.0
    %v94 = vmax.f32 %v90, 0.0
    %v95 = vpack.c.bf16 %v94, %v93
    %v96 = vld [vmem:[%s3] sm:$0xf]
    %v97 = vld [vmem:[%s3 + $0x4] sm:$0xf]
    %v98 = vld [vmem:[%s3 + $0x8] sm:$0xf]
    %v99 = vld [vmem:[%s3 + $0xc] sm:$0xf]
    %v100 = vld [vmem:[%s3 + $0x10] sm:$0xf]
    %v101 = vld [vmem:[%s3 + $0x14] sm:$0xf]
    %v102 = vld [vmem:[%s3 + $0x18] sm:$0xf]
    %v103 = vld [vmem:[%s3 + $0x1c] sm:$0xf]
    %v104 = vld [vmem:[%s4] sm:$0x1]
    %v106 = vlaneseq
    %v107 = vshrl.u32 %v106, 7
    %v108 = vsub.s32 0, %v107
    %v109 = vrot.slane %v104, %v108
    %v119 = vunpack.c.l.b16 %v96
    %v120 = vunpack.c.l.b16 %v97
    %v121 = vunpack.c.l.b16 %v98
    %v122 = vunpack.c.l.b16 %v99
    %v123 = vunpack.c.l.b16 %v100
    %v124 = vunpack.c.l.b16 %v101
    %v125 = vunpack.c.l.b16 %v102
    %v126 = vunpack.c.l.b16 %v103
    %v127 = vpack.c.b16 %v120, %v119
    %v128 = vpack.c.b16 %v122, %v121
    %v129 = vpack.c.b16 %v124, %v123
    %v130 = vpack.c.b16 %v126, %v125
    %vm135 = vcmask 523264
    %v137 = vsel %vm135, %v95, 0
    %139 = vmatprep.subr.bf16.mxu0 0
    %140 = vmatpush1.bf16.msra.mxu0 %v127
    %141 = vmatprep.subr.bf16.mxu0 0
    %142 = vmatpush1.bf16.msra.mxu0 %v128
    %143 = vmatprep.subr.bf16.mxu0 0
    %144 = vmatpush1.bf16.msra.mxu0 %v129
    %145 = vmatprep.subr.bf16.mxu0 0
    %146 = vmatpush1.bf16.msra.mxu0 %v130
    %147 = vmatprep.subr.bf16.mxu0 0
    %148 = vmatpush1.bf16.msra.mxu0 0
    %149 = vmatprep.subr.bf16.mxu0 0
    %150 = vmatpush1.bf16.msra.mxu0 0
    %151 = vmatprep.subr.bf16.mxu0 0
    %152 = vmatpush1.bf16.msra.mxu0 0
    %153 = vmatprep.subr.bf16.mxu0 0
    %154 = vmatpush1.bf16.msra.mxu0 0
    %155 = vmatprep.subr.bf16.mxu0 0
    %156 = vmatpush1.bf16.msra.mxu0 0
    %157 = vmatprep.subr.bf16.mxu0 0
    %158 = vmatpush1.bf16.msra.mxu0 0
    %159 = vmatprep.subr.bf16.mxu0 0
    %160 = vmatpush1.bf16.msra.mxu0 0
    %161 = vmatprep.subr.bf16.mxu0 0
    %162 = vmatpush1.bf16.msra.mxu0 0
    %163 = vmatprep.subr.bf16.mxu0 0
    %164 = vmatpush1.bf16.msra.mxu0 0
    %165 = vmatprep.subr.bf16.mxu0 0
    %166 = vmatpush1.bf16.msra.mxu0 0
    %167 = vmatprep.subr.bf16.mxu0 0
    %168 = vmatpush1.bf16.msra.mxu0 0
    %169 = vmatprep.subr.bf16.mxu0 0
    %170 = vmatpush1.bf16.msra.mxu0 0
    %171 = vmatprep.mubr.bf16.mxu0 0
    %172 = vmatmul.mubr.bf16.gmra.mrb[0].mxu0 %v137
    %v173 = vpop.f32.mrb[0].mxu0
    %v174 = vadd.f32 %v109, %v173
    %v175 = vpop.f32.mrb[0].mxu0
    %v176 = vpop.f32.mrb[0].mxu0
    %v177 = vadd.f32 %v109, %v176
    %v178 = vpop.f32.mrb[0].mxu0
    %179 = vdwg.mxu0
    %180 = vst.msk [vmem:[#allocation2] sm:$0xff] %vm48, %v174
    %181 = vst.msk [vmem:[#allocation2 + $0x8] sm:$0xff] %vm48, %v177
    // Predicated region
    $region22: #{tpu_custom_call.1} parent=1 // pred_check
      _
    $region23: #{tpu_custom_call.1} parent=1 // pred_check_branch
      %183 = sbr.rel (0) target = $region25
    $region24: #{tpu_custom_call.1} parent=1 // pred_region
      %s185 = ssub.s32 256, 256
      %186 = vsyncadd [#allocation3], %s185
      %s187 = sshll.u32 [#allocation2], 4
      %s188 = int_to_ptr.vmem [resolvable:$true] %s187
      %193 = dma.vmem_to_hbm [thread:$0]  %s188, 256, %s5, [#allocation3], 128, 128, 8
    $region25: #{tpu_custom_call.1} parent=1 // pred_fallthru
      _
    // Predicated region
    $region26: #{tpu_custom_call.1} parent=1 // pred_check
      _
    $region27: #{tpu_custom_call.1} parent=1 // pred_check_branch
      %195 = sbr.rel (0) target = $region29
    $region28: #{tpu_custom_call.1} parent=1 // pred_region
      %196 = dma.done [#allocation3], 256
    $region29: #{tpu_custom_call.1} parent=1 // pred_fallthru
      _
    %197 = vsyncpa [#allocation3], 1

</llo_original>
